<compile_context>
chip_gen: v5e
topology: v5e:2x2
jax: 0.10.0
libtpu: 0.0.40
codegen_flags: <defaults>
</compile_context>

<pallas_src>
import numpy as np
import jax
import jax.numpy as jnp
from jax import lax
from jax.experimental import pallas as pl
from jax.experimental.pallas import tpu as pltpu


def preact_block_kernel(x_ref, s1_ref, b1_ref, wb1_ref, s2_ref, b2_ref, wb2_ref,
                        o_ref, band1_ref, band2_ref):
    """bn1+relu -> conv1(3x3) + fused 1x1 shortcut -> bn2+relu -> conv2(3x3) -> add."""
    H, B, WCi = x_ref.shape
    WCo = o_ref.shape[2]
    M = H * B
    bf16 = jnp.bfloat16

    # ---- BN1 (folded running-stats affine, f32) + ReLU; single cast to bf16 ----
    x = x_ref[...].astype(jnp.float32)                                 # (H, B, W*Cin)
    a = jnp.maximum(x * s1_ref[...].reshape(1, 1, WCi)
                    + b1_ref[...].reshape(1, 1, WCi), 0.0)
    a16 = a.astype(bf16)

    # ---- build conv1 im2col band in bf16 scratch; K layout = [kh0 | kh1 | kh2] ----
    # H shifts use only leading-axis slices (contiguous, no packed-sublane issues);
    # the kw taps and the W-direction zero padding are folded into the weights.
    band1_ref[:, :, WCi:2 * WCi] = a16                                  # kh=1: row h
    band1_ref[0:1, :, 0:WCi] = jnp.zeros((1, B, WCi), bf16)             # kh=0: top zero pad
    band1_ref[1:H, :, 0:WCi] = a16[0:H - 1]                             # kh=0: row h-1
    band1_ref[0:H - 1, :, 2 * WCi:3 * WCi] = a16[1:H]                   # kh=2: row h+1
    band1_ref[H - 1:H, :, 2 * WCi:3 * WCi] = jnp.zeros((1, B, WCi), bf16)  # kh=2: bottom pad

    # ---- conv1 (3x3, pad 1) + fused 1x1 shortcut: ONE MXU matmul, K = 3*W*Cin ----
    fused = jnp.dot(band1_ref[...].reshape(M, 3 * WCi), wb1_ref[...],
                    preferred_element_type=jnp.float32)                 # (M, 2*W*Cout)
    acc1 = fused[:, :WCo]                                               # conv1 (128-aligned split)
    sc = fused[:, WCo:]                                                 # 1x1 shortcut

    # ---- BN2 + ReLU (scale/bias pre-tiled to width W*Cout -> lane-dense) ----
    bact = jnp.maximum(acc1 * s2_ref[...] + b2_ref[...], 0.0)           # (M, W*Cout) f32
    b16 = bact.astype(bf16).reshape(H, B, WCo)

    # ---- conv2 (3x3, pad 1): same banded single-matmul structure, K = 3*W*Cout ----
    band2_ref[:, :, WCo:2 * WCo] = b16
    band2_ref[0:1, :, 0:WCo] = jnp.zeros((1, B, WCo), bf16)
    band2_ref[1:H, :, 0:WCo] = b16[0:H - 1]
    band2_ref[0:H - 1, :, 2 * WCo:3 * WCo] = b16[1:H]
    band2_ref[H - 1:H, :, 2 * WCo:3 * WCo] = jnp.zeros((1, B, WCo), bf16)

    acc2 = jnp.dot(band2_ref[...].reshape(M, 3 * WCo), wb2_ref[...],
                   preferred_element_type=jnp.float32)                  # (M, W*Cout)

    # ---- residual add (f32) -> lane-dense bf16 output store ----
    o_ref[...] = (acc2 + sc).reshape(H, B, WCo).astype(o_ref.dtype)


def preact_block(x_rows, s1w, b1w, wb1, s2w, b2w, wb2, *, images_per_step=None):
    """x_rows: (H, N, W*Cin) bf16, H-major rows.  Returns (H, N, W*Cout) bf16."""
    H, N, WCi = x_rows.shape
    WCo = wb2.shape[-1]
    B = N if images_per_step is None else images_per_step
    assert N % B == 0
    # The batch chunk is the block's second-minor dim: it must cover the whole
    # batch or be sublane-tile aligned (16 rows for bf16).
    assert B == N or B % 16 == 0, "images_per_step must be N or a multiple of 16"

    return pl.pallas_call(
        preact_block_kernel,
        out_shape=jax.ShapeDtypeStruct((H, N, WCo), jnp.bfloat16),
        grid_spec=pltpu.PrefetchScalarGridSpec(
            num_scalar_prefetch=0,
            grid=(N // B,),
            in_specs=[
                pl.BlockSpec((H, B, WCi), lambda n: (0, n, 0)),
                pl.BlockSpec((1, WCi), lambda n: (0, 0)),
                pl.BlockSpec((1, WCi), lambda n: (0, 0)),
                pl.BlockSpec(wb1.shape, lambda n: (0, 0)),
                pl.BlockSpec((1, WCo), lambda n: (0, 0)),
                pl.BlockSpec((1, WCo), lambda n: (0, 0)),
                pl.BlockSpec(wb2.shape, lambda n: (0, 0)),
            ],
            out_specs=pl.BlockSpec((H, B, WCo), lambda n: (0, n, 0)),
            scratch_shapes=[
                pltpu.VMEM((H, B, 3 * WCi), jnp.bfloat16),   # conv1 im2col band
                pltpu.VMEM((H, B, 3 * WCo), jnp.bfloat16),   # conv2 im2col band
            ],
        ),
        compiler_params=pltpu.CompilerParams(
            dimension_semantics=("parallel",)),
    )(x_rows, s1w, b1w, wb1, s2w, b2w, wb2)


# ---------------- wrapper-side parameter folding (plain JAX / numpy) ----------------

def _fold_bn(gamma, beta, mean, var, eps=1e-5):
    scale = gamma / jnp.sqrt(var + eps)
    bias = beta - mean * scale
    return scale, bias


def _band_weights(w3x3_oihw, W, extra_center=None):
    """Fold 3x3 taps + zero padding along W into ONE banded matmul weight (bf16).

    Returns (3*W*Cin, W*(Cout+Cex)) with row index kh*W*Cin + src_w*Cin + ci and
    column index out_w*Cout + co; if extra_center (Cex, Cin) is given (a fused 1x1
    conv), it occupies the trailing W*Cex columns of the center (kh==1) rows.
    """
    w = np.asarray(w3x3_oihw, np.float32)                    # (Cout, Cin, 3, 3)
    Cout, Cin = w.shape[0], w.shape[1]
    Cex = 0 if extra_center is None else int(extra_center.shape[0])
    wb = np.zeros((3, W * Cin, W * (Cout + Cex)), np.float32)
    for kh in range(3):
        for kw in range(3):
            tap = w[:, :, kh, kw].T                          # (Cin, Cout)
            for wc in range(W):
                src = wc + kw - 1
                if 0 <= src < W:
                    wb[kh, src * Cin:(src + 1) * Cin,
                       wc * Cout:(wc + 1) * Cout] = tap
    if extra_center is not None:
        ex = np.asarray(extra_center, np.float32).T          # (Cin, Cex)
        base = W * Cout
        for wc in range(W):
            wb[1, wc * Cin:(wc + 1) * Cin,
               base + wc * Cex: base + (wc + 1) * Cex] = ex
    # TODO(synk): for v5e, tile W (halo of 1) so band density rises above ~3/W
    # and the MXU stops multiplying zeros.
    return jnp.asarray(wb.reshape(3 * W * Cin, W * (Cout + Cex)), jnp.bfloat16)


def _ref_forward(x_nhwc_bf16, scale1, bias1, w1, scale2, bias2, w2, wsc):
    """Pure-JAX reference mirroring the kernel's precision (bf16 operands, f32 acc)."""
    f32 = jnp.float32
    q = lambda t: t.astype(jnp.bfloat16).astype(f32)

    def conv(x, w_oihw, padding):
        w_hwio = jnp.transpose(q(w_oihw.astype(f32)), (2, 3, 1, 0))
        return lax.conv_general_dilated(
            x, w_hwio, window_strides=(1, 1), padding=padding,
            dimension_numbers=("NHWC", "HWIO", "NHWC"),
            preferred_element_type=f32)

    x = x_nhwc_bf16.astype(f32)
    a = jnp.maximum(x * scale1.reshape(1, 1, 1, -1) + bias1.reshape(1, 1, 1, -1), 0.0)
    a = q(a)
    sc = conv(a, wsc, "VALID")
    out = conv(a, w1, ((1, 1), (1, 1)))
    out = jnp.maximum(out * scale2.reshape(1, 1, 1, -1) + bias2.reshape(1, 1, 1, -1), 0.0)
    out = conv(q(out), w2, ((1, 1), (1, 1)))
    return out + sc


if __name__ == "__main__":
    key = jax.random.PRNGKey(0)
    N, Cin, H, W = 2, 4, 16, 16        # small NCHW input for Conv2d/BatchNorm2d
    planes = 8                          # in_planes != planes -> 1x1-conv shortcut path
    stride = 1

    keys = jax.random.split(key, 12)
    x_nchw = jax.random.normal(keys[0], (N, Cin, H, W), jnp.float32)

    # BatchNorm2d(in_planes) params + running stats (deterministic synthetic values)
    gamma1 = 0.5 + jax.random.uniform(keys[1], (Cin,), jnp.float32)
    beta1 = 0.1 * jax.random.normal(keys[2], (Cin,), jnp.float32)
    mean1 = 0.1 * jax.random.normal(keys[3], (Cin,), jnp.float32)
    var1 = 0.5 + jax.random.uniform(keys[4], (Cin,), jnp.float32)

    # conv1: (planes, in_planes, 3, 3), no bias
    w1 = 0.2 * jax.random.normal(keys[5], (planes, Cin, 3, 3), jnp.float32)

    # BatchNorm2d(planes)
    gamma2 = 0.5 + jax.random.uniform(keys[6], (planes,), jnp.float32)
    beta2 = 0.1 * jax.random.normal(keys[7], (planes,), jnp.float32)
    mean2 = 0.1 * jax.random.normal(keys[8], (planes,), jnp.float32)
    var2 = 0.5 + jax.random.uniform(keys[9], (planes,), jnp.float32)

    # conv2: (planes, planes, 3, 3), no bias
    w2 = 0.2 * jax.random.normal(keys[10], (planes, planes, 3, 3), jnp.float32)

    # shortcut: 1x1 conv (planes, in_planes, 1, 1), no bias
    wsc = 0.2 * jax.random.normal(keys[11], (planes, Cin, 1, 1), jnp.float32)

    # ---- glue: layout / parameter folding ----
    x_nhwc = jnp.transpose(x_nchw, (0, 2, 3, 1))             # NCHW -> NHWC
    x_bf16 = x_nhwc.astype(jnp.bfloat16)
    x_rows = jnp.transpose(x_bf16, (1, 0, 2, 3)).reshape(H, N, W * Cin)  # H-major rows

    scale1, bias1 = _fold_bn(gamma1, beta1, mean1, var1)     # (Cin,)
    scale2, bias2 = _fold_bn(gamma2, beta2, mean2, var2)     # (planes,)
    s1w = jnp.tile(scale1, W).reshape(1, W * Cin)            # f32, lane-dense affine
    b1w = jnp.tile(bias1, W).reshape(1, W * Cin)
    s2w = jnp.tile(scale2, W).reshape(1, W * planes)
    b2w = jnp.tile(bias2, W).reshape(1, W * planes)

    wb1 = _band_weights(w1, W, extra_center=wsc[:, :, 0, 0])  # (3*W*Cin, 2*W*planes)
    wb2 = _band_weights(w2, W)                                # (3*W*planes, W*planes)

    out_rows = preact_block(x_rows, s1w, b1w, wb1, s2w, b2w, wb2)
    out_rows = jax.block_until_ready(out_rows)
    out = jnp.transpose(out_rows.reshape(H, N, W, planes),
                        (1, 0, 2, 3)).astype(jnp.float32)     # back to NHWC

    # verify against pure-JAX reference (same bf16 rounding points, f32 accumulation)
    ref = _ref_forward(x_bf16, scale1, bias1, w1, scale2, bias2, w2, wsc)
    assert out.shape == (N, H, W, planes)
    assert jnp.allclose(out, ref, atol=3e-2, rtol=3e-2), "mismatch vs reference"

    print("KERNEL_OK")
</pallas_src>

<mosaic_0001>
module attributes {stable_mosaic.version = 11 : i64} {
  func.func @preact_block_kernel(%arg0: i32, %arg1: memref<16x2x64xbf16, #tpu.memory_space<vmem>>, %arg2: memref<1x64xf32, #tpu.memory_space<vmem>>, %arg3: memref<1x64xf32, #tpu.memory_space<vmem>>, %arg4: memref<192x256xbf16, #tpu.memory_space<vmem>>, %arg5: memref<1x128xf32, #tpu.memory_space<vmem>>, %arg6: memref<1x128xf32, #tpu.memory_space<vmem>>, %arg7: memref<384x128xbf16, #tpu.memory_space<vmem>>, %arg8: memref<16x2x128xbf16, #tpu.memory_space<vmem>>, %arg9: memref<16x2x192xbf16, #tpu.memory_space<vmem>>, %arg10: memref<16x2x384xbf16, #tpu.memory_space<vmem>>) attributes {dimension_semantics = [#tpu.dimension_semantics<parallel>], iteration_bounds = array<i64: 1>, scalar_prefetch = 0 : i64, scratch_operands = 2 : i64, tpu.core_type = #tpu.core_type<tc>, window_params = [{transform_indices = @transform_0, window_bounds = array<i64: 16, 2, 64>}, {pipeline_mode = #tpu.pipeline_mode<synchronous>, transform_indices = @transform_1, window_bounds = array<i64: 1, 64>}, {pipeline_mode = #tpu.pipeline_mode<synchronous>, transform_indices = @transform_2, window_bounds = array<i64: 1, 64>}, {pipeline_mode = #tpu.pipeline_mode<synchronous>, transform_indices = @transform_3, window_bounds = array<i64: 192, 256>}, {pipeline_mode = #tpu.pipeline_mode<synchronous>, transform_indices = @transform_4, window_bounds = array<i64: 1, 128>}, {pipeline_mode = #tpu.pipeline_mode<synchronous>, transform_indices = @transform_5, window_bounds = array<i64: 1, 128>}, {pipeline_mode = #tpu.pipeline_mode<synchronous>, transform_indices = @transform_6, window_bounds = array<i64: 384, 128>}, {transform_indices = @transform_7, window_bounds = array<i64: 16, 2, 128>}]} {
    %c0 = arith.constant 0 : index
    %c0_0 = arith.constant 0 : index
    %c0_1 = arith.constant 0 : index
    %0 = vector.load %arg1[%c0, %c0_0, %c0_1] : memref<16x2x64xbf16, #tpu.memory_space<vmem>>, vector<16x2x64xbf16>
    %1 = arith.extf %0 : vector<16x2x64xbf16> to vector<16x2x64xf32>
    %c0_2 = arith.constant 0 : index
    %c0_3 = arith.constant 0 : index
    %2 = vector.load %arg2[%c0_2, %c0_3] : memref<1x64xf32, #tpu.memory_space<vmem>>, vector<1x64xf32>
    %3 = vector.shape_cast %2 : vector<1x64xf32> to vector<1x1x64xf32>
    %4 = vector.broadcast %3 : vector<1x1x64xf32> to vector<16x2x64xf32>
    %5 = arith.mulf %1, %4 : vector<16x2x64xf32>
    %c0_4 = arith.constant 0 : index
    %c0_5 = arith.constant 0 : index
    %6 = vector.load %arg3[%c0_4, %c0_5] : memref<1x64xf32, #tpu.memory_space<vmem>>, vector<1x64xf32>
    %7 = vector.shape_cast %6 : vector<1x64xf32> to vector<1x1x64xf32>
    %8 = vector.broadcast %7 : vector<1x1x64xf32> to vector<16x2x64xf32>
    %9 = arith.addf %5, %8 : vector<16x2x64xf32>
    %cst = arith.constant 0.000000e+00 : f32
    %10 = vector.broadcast %cst : f32 to vector<16x2x64xf32>
    %11 = arith.maximumf %9, %10 : vector<16x2x64xf32>
    %12 = arith.truncf %11 : vector<16x2x64xf32> to vector<16x2x64xbf16>
    %c0_6 = arith.constant 0 : index
    %c0_7 = arith.constant 0 : index
    %c64 = arith.constant 64 : index
    %13 = vector.load %arg9[%c0_6, %c0_7, %c64] : memref<16x2x192xbf16, #tpu.memory_space<vmem>>, vector<16x2x64xbf16>
    tpu.vector_store %arg9[%c0_6, %c0_7, %c64], %12 {strides = array<i32>} : memref<16x2x192xbf16, #tpu.memory_space<vmem>>, vector<16x2x64xbf16>,
    %cst_8 = arith.constant 0.000000e+00 : bf16
    %14 = vector.broadcast %cst_8 : bf16 to vector<1x2x64xbf16>
    %c0_9 = arith.constant 0 : index
    %c0_10 = arith.constant 0 : index
    %c0_11 = arith.constant 0 : index
    %15 = vector.load %arg9[%c0_9, %c0_10, %c0_11] : memref<16x2x192xbf16, #tpu.memory_space<vmem>>, vector<1x2x64xbf16>
    tpu.vector_store %arg9[%c0_9, %c0_10, %c0_11], %14 {strides = array<i32>} : memref<16x2x192xbf16, #tpu.memory_space<vmem>>, vector<1x2x64xbf16>,
    %16 = vector.extract_strided_slice %12 {offsets = [0, 0, 0], sizes = [15, 2, 64], strides = [1, 1, 1]} : vector<16x2x64xbf16> to vector<15x2x64xbf16>
    %c1 = arith.constant 1 : index
    %c0_12 = arith.constant 0 : index
    %c0_13 = arith.constant 0 : index
    %17 = vector.load %arg9[%c1, %c0_12, %c0_13] : memref<16x2x192xbf16, #tpu.memory_space<vmem>>, vector<15x2x64xbf16>
    tpu.vector_store %arg9[%c1, %c0_12, %c0_13], %16 {strides = array<i32>} : memref<16x2x192xbf16, #tpu.memory_space<vmem>>, vector<15x2x64xbf16>,
    %18 = vector.extract_strided_slice %12 {offsets = [1, 0, 0], sizes = [15, 2, 64], strides = [1, 1, 1]} : vector<16x2x64xbf16> to vector<15x2x64xbf16>
    %c0_14 = arith.constant 0 : index
    %c0_15 = arith.constant 0 : index
    %c128 = arith.constant 128 : index
    %19 = vector.load %arg9[%c0_14, %c0_15, %c128] : memref<16x2x192xbf16, #tpu.memory_space<vmem>>, vector<15x2x64xbf16>
    tpu.vector_store %arg9[%c0_14, %c0_15, %c128], %18 {strides = array<i32>} : memref<16x2x192xbf16, #tpu.memory_space<vmem>>, vector<15x2x64xbf16>,
    %cst_16 = arith.constant 0.000000e+00 : bf16
    %20 = vector.broadcast %cst_16 : bf16 to vector<1x2x64xbf16>
    %c15 = arith.constant 15 : index
    %c0_17 = arith.constant 0 : index
    %c128_18 = arith.constant 128 : index
    %21 = vector.load %arg9[%c15, %c0_17, %c128_18] : memref<16x2x192xbf16, #tpu.memory_space<vmem>>, vector<1x2x64xbf16>
    tpu.vector_store %arg9[%c15, %c0_17, %c128_18], %20 {strides = array<i32>} : memref<16x2x192xbf16, #tpu.memory_space<vmem>>, vector<1x2x64xbf16>,
    %c0_19 = arith.constant 0 : index
    %c0_20 = arith.constant 0 : index
    %c0_21 = arith.constant 0 : index
    %22 = vector.load %arg9[%c0_19, %c0_20, %c0_21] : memref<16x2x192xbf16, #tpu.memory_space<vmem>>, vector<16x2x192xbf16>
    %23 = vector.shape_cast %22 : vector<16x2x192xbf16> to vector<32x192xbf16>
    %c0_22 = arith.constant 0 : index
    %c0_23 = arith.constant 0 : index
    %24 = vector.load %arg4[%c0_22, %c0_23] : memref<192x256xbf16, #tpu.memory_space<vmem>>, vector<192x256xbf16>
    %cst_24 = arith.constant dense<0.000000e+00> : vector<32x256xf32>
    %25 = tpu.matmul %23, %24, %cst_24 {dimension_numbers = #tpu.dot_dimension_numbers<[1], [0], [0], [1], [0, 0, 1, 1], [], []>} : vector<32x192xbf16>, vector<192x256xbf16>, vector<32x256xf32> -> vector<32x256xf32>
    %26 = vector.extract_strided_slice %25 {offsets = [0, 0], sizes = [32, 128], strides = [1, 1]} : vector<32x256xf32> to vector<32x128xf32>
    %27 = vector.extract_strided_slice %25 {offsets = [0, 128], sizes = [32, 128], strides = [1, 1]} : vector<32x256xf32> to vector<32x128xf32>
    %c0_25 = arith.constant 0 : index
    %c0_26 = arith.constant 0 : index
    %28 = vector.load %arg5[%c0_25, %c0_26] : memref<1x128xf32, #tpu.memory_space<vmem>>, vector<1x128xf32>
    %29 = vector.broadcast %28 : vector<1x128xf32> to vector<32x128xf32>
    %30 = arith.mulf %26, %29 : vector<32x128xf32>
    %c0_27 = arith.constant 0 : index
    %c0_28 = arith.constant 0 : index
    %31 = vector.load %arg6[%c0_27, %c0_28] : memref<1x128xf32, #tpu.memory_space<vmem>>, vector<1x128xf32>
    %32 = vector.broadcast %31 : vector<1x128xf32> to vector<32x128xf32>
    %33 = arith.addf %30, %32 : vector<32x128xf32>
    %cst_29 = arith.constant 0.000000e+00 : f32
    %34 = vector.broadcast %cst_29 : f32 to vector<32x128xf32>
    %35 = arith.maximumf %33, %34 : vector<32x128xf32>
    %36 = arith.truncf %35 : vector<32x128xf32> to vector<32x128xbf16>
    %37 = vector.shape_cast %36 : vector<32x128xbf16> to vector<16x2x128xbf16>
    %c0_30 = arith.constant 0 : index
    %c0_31 = arith.constant 0 : index
    %c128_32 = arith.constant 128 : index
    %38 = vector.load %arg10[%c0_30, %c0_31, %c128_32] : memref<16x2x384xbf16, #tpu.memory_space<vmem>>, vector<16x2x128xbf16>
    tpu.vector_store %arg10[%c0_30, %c0_31, %c128_32], %37 {strides = array<i32>} : memref<16x2x384xbf16, #tpu.memory_space<vmem>>, vector<16x2x128xbf16>,
    %cst_33 = arith.constant 0.000000e+00 : bf16
    %39 = vector.broadcast %cst_33 : bf16 to vector<1x2x128xbf16>
    %c0_34 = arith.constant 0 : index
    %c0_35 = arith.constant 0 : index
    %c0_36 = arith.constant 0 : index
    %40 = vector.load %arg10[%c0_34, %c0_35, %c0_36] : memref<16x2x384xbf16, #tpu.memory_space<vmem>>, vector<1x2x128xbf16>
    tpu.vector_store %arg10[%c0_34, %c0_35, %c0_36], %39 {strides = array<i32>} : memref<16x2x384xbf16, #tpu.memory_space<vmem>>, vector<1x2x128xbf16>,
    %41 = vector.extract_strided_slice %37 {offsets = [0, 0, 0], sizes = [15, 2, 128], strides = [1, 1, 1]} : vector<16x2x128xbf16> to vector<15x2x128xbf16>
    %c1_37 = arith.constant 1 : index
    %c0_38 = arith.constant 0 : index
    %c0_39 = arith.constant 0 : index
    %42 = vector.load %arg10[%c1_37, %c0_38, %c0_39] : memref<16x2x384xbf16, #tpu.memory_space<vmem>>, vector<15x2x128xbf16>
    tpu.vector_store %arg10[%c1_37, %c0_38, %c0_39], %41 {strides = array<i32>} : memref<16x2x384xbf16, #tpu.memory_space<vmem>>, vector<15x2x128xbf16>,
    %43 = vector.extract_strided_slice %37 {offsets = [1, 0, 0], sizes = [15, 2, 128], strides = [1, 1, 1]} : vector<16x2x128xbf16> to vector<15x2x128xbf16>
    %c0_40 = arith.constant 0 : index
    %c0_41 = arith.constant 0 : index
    %c256 = arith.constant 256 : index
    %44 = vector.load %arg10[%c0_40, %c0_41, %c256] : memref<16x2x384xbf16, #tpu.memory_space<vmem>>, vector<15x2x128xbf16>
    tpu.vector_store %arg10[%c0_40, %c0_41, %c256], %43 {strides = array<i32>} : memref<16x2x384xbf16, #tpu.memory_space<vmem>>, vector<15x2x128xbf16>,
    %cst_42 = arith.constant 0.000000e+00 : bf16
    %45 = vector.broadcast %cst_42 : bf16 to vector<1x2x128xbf16>
    %c15_43 = arith.constant 15 : index
    %c0_44 = arith.constant 0 : index
    %c256_45 = arith.constant 256 : index
    %46 = vector.load %arg10[%c15_43, %c0_44, %c256_45] : memref<16x2x384xbf16, #tpu.memory_space<vmem>>, vector<1x2x128xbf16>
    tpu.vector_store %arg10[%c15_43, %c0_44, %c256_45], %45 {strides = array<i32>} : memref<16x2x384xbf16, #tpu.memory_space<vmem>>, vector<1x2x128xbf16>,
    %c0_46 = arith.constant 0 : index
    %c0_47 = arith.constant 0 : index
    %c0_48 = arith.constant 0 : index
    %47 = vector.load %arg10[%c0_46, %c0_47, %c0_48] : memref<16x2x384xbf16, #tpu.memory_space<vmem>>, vector<16x2x384xbf16>
    %48 = vector.shape_cast %47 : vector<16x2x384xbf16> to vector<32x384xbf16>
    %c0_49 = arith.constant 0 : index
    %c0_50 = arith.constant 0 : index
    %49 = vector.load %arg7[%c0_49, %c0_50] : memref<384x128xbf16, #tpu.memory_space<vmem>>, vector<384x128xbf16>
    %cst_51 = arith.constant dense<0.000000e+00> : vector<32x128xf32>
    %50 = tpu.matmul %48, %49, %cst_51 {dimension_numbers = #tpu.dot_dimension_numbers<[1], [0], [0], [1], [0, 0, 1, 1], [], []>} : vector<32x384xbf16>, vector<384x128xbf16>, vector<32x128xf32> -> vector<32x128xf32>
    %51 = arith.addf %50, %27 : vector<32x128xf32>
    %52 = vector.shape_cast %51 : vector<32x128xf32> to vector<16x2x128xf32>
    %53 = arith.truncf %52 : vector<16x2x128xf32> to vector<16x2x128xbf16>
    %c0_52 = arith.constant 0 : index
    %c0_53 = arith.constant 0 : index
    %c0_54 = arith.constant 0 : index
    %54 = vector.load %arg8[%c0_52, %c0_53, %c0_54] : memref<16x2x128xbf16, #tpu.memory_space<vmem>>, vector<16x2x128xbf16>
    tpu.vector_store %arg8[%c0_52, %c0_53, %c0_54], %53 {strides = array<i32>} : memref<16x2x128xbf16, #tpu.memory_space<vmem>>, vector<16x2x128xbf16>,
    return
  }
  func.func @transform_0(%arg0: i32) -> (i32, i32, i32) {
    %c0_i32 = arith.constant 0 : i32
    %c0_i32_0 = arith.constant 0 : i32
    %c0_i32_1 = arith.constant 0 : i32
    return %c0_i32, %arg0, %c0_i32_0 : i32, i32, i32
  }
  func.func @transform_1(%arg0: i32) -> (i32, i32) {
    %c0_i32 = arith.constant 0 : i32
    %c0_i32_0 = arith.constant 0 : i32
    %c0_i32_1 = arith.constant 0 : i32
    return %c0_i32, %c0_i32_0 : i32, i32
  }
  func.func @transform_2(%arg0: i32) -> (i32, i32) {
    %c0_i32 = arith.constant 0 : i32
    %c0_i32_0 = arith.constant 0 : i32
    %c0_i32_1 = arith.constant 0 : i32
    return %c0_i32, %c0_i32_0 : i32, i32
  }
  func.func @transform_3(%arg0: i32) -> (i32, i32) {
    %c0_i32 = arith.constant 0 : i32
    %c0_i32_0 = arith.constant 0 : i32
    %c0_i32_1 = arith.constant 0 : i32
    return %c0_i32, %c0_i32_0 : i32, i32
  }
  func.func @transform_4(%arg0: i32) -> (i32, i32) {
    %c0_i32 = arith.constant 0 : i32
    %c0_i32_0 = arith.constant 0 : i32
    %c0_i32_1 = arith.constant 0 : i32
    return %c0_i32, %c0_i32_0 : i32, i32
  }
  func.func @transform_5(%arg0: i32) -> (i32, i32) {
    %c0_i32 = arith.constant 0 : i32
    %c0_i32_0 = arith.constant 0 : i32
    %c0_i32_1 = arith.constant 0 : i32
    return %c0_i32, %c0_i32_0 : i32, i32
  }
  func.func @transform_6(%arg0: i32) -> (i32, i32) {
    %c0_i32 = arith.constant 0 : i32
    %c0_i32_0 = arith.constant 0 : i32
    %c0_i32_1 = arith.constant 0 : i32
    return %c0_i32, %c0_i32_0 : i32, i32
  }
  func.func @transform_7(%arg0: i32) -> (i32, i32, i32) {
    %c0_i32 = arith.constant 0 : i32
    %c0_i32_0 = arith.constant 0 : i32
    %c0_i32_1 = arith.constant 0 : i32
    return %c0_i32, %arg0, %c0_i32_0 : i32, i32, i32
  }
}

</mosaic_0001>

<llo_original>
// kernel: tpu_custom_call.1
$region0: #{tpu_custom_call.1}
  #allocation0 [shape = 'u32[]', space=smem, size = 0x4, offset = 0x4, fixed_abs, tag = 'smem constant byte address 0x4 - core index']
  #allocation1 [shape = 'u32[72,128]{1,0:T(1,128)}', space=vmem, size = 0x9000, scoped, tag = 'internal scratch']
  #allocation2 [shape = 'bf16[16,2,192]{2,1,0:T(2,128)(2,1)}', space=vmem, size = 0x4000, scoped, tag = 'scratch operand']
  #allocation3 [shape = 'bf16[16,2,384]{2,1,0:T(2,128)(2,1)}', space=vmem, size = 0x6000, scoped, tag = 'scratch operand']
  %s0 = inlined_call_operand.hbm [shape: bf16[16,2,64], index: 0, kind: input, shape index: {}]
  %s1 = inlined_call_operand.hbm [shape: f32[1,64], index: 1, kind: input, shape index: {}]
  %s2 = inlined_call_operand.vmem [shape: f32[1,64], index: 2, kind: input, shape index: {}]
  %s3 = inlined_call_operand.hbm [shape: bf16[192,256], index: 3, kind: input, shape index: {}]
  %s4 = inlined_call_operand.vmem [shape: f32[1,128], index: 4, kind: input, shape index: {}]
  %s5 = inlined_call_operand.vmem [shape: f32[1,128], index: 5, kind: input, shape index: {}]
  %s6 = inlined_call_operand.hbm [shape: bf16[384,128], index: 6, kind: input, shape index: {}]
  %s7 = inlined_call_operand.hbm [shape: bf16[16,2,128], index: 7, kind: output, shape index: {}]
  %s8 = sld [smem:[#allocation0]]
  $region54: #{tpu_custom_call.1} parent=0
    _
  %s10 = ssub.s32 1, %s8
  %s11 = scalar_select 0, %s10, %s8
  $region1: #{tpu_custom_call.1} parent=0
    #allocation4 [shape = 'u8[8192]{0}', space=vmem, size = 0x2000, scoped, tag = 'input window, operand 0, single buffered']
    #allocation5 [shape = 's32[1]{0}', space=sflag, size = 0x4, scoped, tag = 'scoped memory for tpu_custom_call.1']
    #allocation6 [shape = 's32[1]{0}', space=sflag, size = 0x4, scoped, tag = 'scoped memory for tpu_custom_call.1']
    #allocation7 [shape = 'u8[512]{0}', space=vmem, size = 0x400, scoped, tag = 'input window, operand 1, single buffered']
    #allocation8 [shape = 's32[1]{0}', space=sflag, size = 0x4, scoped, tag = 'scoped memory for tpu_custom_call.1']
    #allocation9 [shape = 'u8[98304]{0}', space=vmem, size = 0x18000, scoped, tag = 'input window, operand 3, single buffered']
    #allocation10 [shape = 'u8[98304]{0}', space=vmem, size = 0x18000, scoped, tag = 'input window, operand 6, single buffered']
    #allocation11 [shape = 's32[1]{0}', space=sflag, size = 0x4, scoped, tag = 'scoped memory for tpu_custom_call.1']
    #allocation12 [shape = 'u8[8192]{0}', space=vmem, size = 0x2000, scoped, tag = 'output window, operand 0, single buffered']
    %12 = vsyncpa [#allocation5], 0
    %13 = vsyncpa [#allocation8], 0
    %14 = vsyncpa [#allocation11], 0
    %15 = vsyncpa [#allocation6], 0
    // Predicated region
    $region2: #{tpu_custom_call.1} parent=1 // pred_check
      _
    $region3: #{tpu_custom_call.1} parent=1 // pred_check_branch
      %17 = sbr.rel (0) target = $region5
    $region4: #{tpu_custom_call.1} parent=1 // pred_region
      %19 = vsyncadd [#allocation5], 0
      %s20 = sshll.u32 %s0, 4
      %s21 = int_to_ptr.hbm [resolvable:$true] %s20
      %s22 = sshll.u32 [#allocation4], 4
      %s23 = int_to_ptr.vmem [resolvable:$true] %s22
      %28 = dma.hbm_to_vmem [thread:$0]  %s21, 256, %s23, [#allocation5], 16, 16, 1
    $region5: #{tpu_custom_call.1} parent=1 // pred_fallthru
      _
    // Predicated region
    $region6: #{tpu_custom_call.1} parent=1 // pred_check
      _
    $region7: #{tpu_custom_call.1} parent=1 // pred_check_branch
      %30 = sbr.rel (0) target = $region9
    $region8: #{tpu_custom_call.1} parent=1 // pred_region
      %32 = vsyncadd [#allocation8], 0
      %s34 = sshll.u32 %s1, 4
      %s35 = int_to_ptr.hbm [resolvable:$true] %s34
      %s36 = sshll.u32 [#allocation7], 4
      %s37 = int_to_ptr.vmem [resolvable:$true] %s36
      %39 = dma.hbm_to_vmem [thread:$0]  %s35, 16, %s37, [#allocation8]
    $region9: #{tpu_custom_call.1} parent=1 // pred_fallthru
      _
    // Predicated region
    $region10: #{tpu_custom_call.1} parent=1 // pred_check
      _
    $region11: #{tpu_custom_call.1} parent=1 // pred_check_branch
      %41 = sbr.rel (0) target = $region13
    $region12: #{tpu_custom_call.1} parent=1 // pred_region
      _
    $region13: #{tpu_custom_call.1} parent=1 // pred_fallthru
      _
    // Predicated region
    $region14: #{tpu_custom_call.1} parent=1 // pred_check
      _
    $region15: #{tpu_custom_call.1} parent=1 // pred_check_branch
      %43 = sbr.rel (0) target = $region17
    $region16: #{tpu_custom_call.1} parent=1 // pred_region
      %45 = vsyncadd [#allocation8], 0
      %s46 = sshll.u32 %s3, 4
      %s47 = int_to_ptr.hbm [resolvable:$true] %s46
      %s48 = sshll.u32 [#allocation9], 4
      %s49 = int_to_ptr.vmem [resolvable:$true] %s48
      %54 = dma.hbm_to_vmem [thread:$0]  %s47, 3072, %s49, [#allocation8], 128, 128, 8
    $region17: #{tpu_custom_call.1} parent=1 // pred_fallthru
      _
    // Predicated region
    $region18: #{tpu_custom_call.1} parent=1 // pred_check
      _
    $region19: #{tpu_custom_call.1} parent=1 // pred_check_branch
      %56 = sbr.rel (0) target = $region21
    $region20: #{tpu_custom_call.1} parent=1 // pred_region
      _
    $region21: #{tpu_custom_call.1} parent=1 // pred_fallthru
      _
    // Predicated region
    $region22: #{tpu_custom_call.1} parent=1 // pred_check
      _
    $region23: #{tpu_custom_call.1} parent=1 // pred_check_branch
      %58 = sbr.rel (0) target = $region25
    $region24: #{tpu_custom_call.1} parent=1 // pred_region
      _
    $region25: #{tpu_custom_call.1} parent=1 // pred_fallthru
      _
    // Predicated region
    $region26: #{tpu_custom_call.1} parent=1 // pred_check
      _
    $region27: #{tpu_custom_call.1} parent=1 // pred_check_branch
      %60 = sbr.rel (0) target = $region29
    $region28: #{tpu_custom_call.1} parent=1 // pred_region
      %62 = vsyncadd [#allocation11], 0
      %s63 = sshll.u32 %s6, 4
      %s64 = int_to_ptr.hbm [resolvable:$true] %s63
      %s65 = sshll.u32 [#allocation10], 4
      %s66 = int_to_ptr.vmem [resolvable:$true] %s65
      %71 = dma.hbm_to_vmem [thread:$0]  %s64, 3072, %s66, [#allocation11], 64, 64, 4
    $region29: #{tpu_custom_call.1} parent=1 // pred_fallthru
      _
    // Predicated region
    $region30: #{tpu_custom_call.1} parent=1 // pred_check
      _
    $region31: #{tpu_custom_call.1} parent=1 // pred_check_branch
      %73 = sbr.rel (0) target = $region33
    $region32: #{tpu_custom_call.1} parent=1 // pred_region
      %75 = dma.done [#allocation5], 256
    $region33: #{tpu_custom_call.1} parent=1 // pred_fallthru
      _
    // Predicated region
    $region34: #{tpu_custom_call.1} parent=1 // pred_check
      _
    $region35: #{tpu_custom_call.1} parent=1 // pred_check_branch
      %77 = sbr.rel (0) target = $region37
    $region36: #{tpu_custom_call.1} parent=1 // pred_region
      %79 = dma.done [#allocation8], 16
    $region37: #{tpu_custom_call.1} parent=1 // pred_fallthru
      _
    // Predicated region
    $region38: #{tpu_custom_call.1} parent=1 // pred_check
      _
    $region39: #{tpu_custom_call.1} parent=1 // pred_check_branch
      %81 = sbr.rel (0) target = $region41
    $region40: #{tpu_custom_call.1} parent=1 // pred_region
      %83 = dma.done [#allocation8], 3072
    $region41: #{tpu_custom_call.1} parent=1 // pred_fallthru
      _
    // Predicated region
    $region42: #{tpu_custom_call.1} parent=1 // pred_check
      _
    $region43: #{tpu_custom_call.1} parent=1 // pred_check_branch
      %85 = sbr.rel (0) target = $region45
    $region44: #{tpu_custom_call.1} parent=1 // pred_region
      %87 = dma.done [#allocation11], 3072
    $region45: #{tpu_custom_call.1} parent=1 // pred_fallthru
      _
    %v89 = vld [vmem:[#allocation4] sm:$0x1]
    %v90 = vld [vmem:[#allocation4 + $0x1] sm:$0x1]
    %v91 = vld [vmem:[#allocation4 + $0x2] sm:$0x1]
    %v92 = vld [vmem:[#allocation4 + $0x3] sm:$0x1]
    %v93 = vld [vmem:[#allocation4 + $0x4] sm:$0x1]
    %v94 = vld [vmem:[#allocation4 + $0x5] sm:$0x1]
    %v95 = vld [vmem:[#allocation4 + $0x6] sm:$0x1]
    %v96 = vld [vmem:[#allocation4 + $0x7] sm:$0x1]
    %v97 = vld [vmem:[#allocation4 + $0x8] sm:$0x1]
    %v98 = vld [vmem:[#allocation4 + $0x9] sm:$0x1]
    %v99 = vld [vmem:[#allocation4 + $0xa] sm:$0x1]
    %v100 = vld [vmem:[#allocation4 + $0xb] sm:$0x1]
    %v101 = vld [vmem:[#allocation4 + $0xc] sm:$0x1]
    %v102 = vld [vmem:[#allocation4 + $0xd] sm:$0x1]
    %v103 = vld [vmem:[#allocation4 + $0xe] sm:$0x1]
    %v104 = vld [vmem:[#allocation4 + $0xf] sm:$0x1]
    %v105 = vunpack.c.l.bf16 %v89
    %v106 = vunpack.c.l.bf16 %v90
    %v107 = vunpack.c.l.bf16 %v91
    %v108 = vunpack.c.l.bf16 %v92
    %v109 = vunpack.c.l.bf16 %v93
    %v110 = vunpack.c.l.bf16 %v94
    %v111 = vunpack.c.l.bf16 %v95
    %v112 = vunpack.c.l.bf16 %v96
    %v113 = vunpack.c.l.bf16 %v97
    %v114 = vunpack.c.l.bf16 %v98
    %v115 = vunpack.c.l.bf16 %v99
    %v116 = vunpack.c.l.bf16 %v100
    %v117 = vunpack.c.l.bf16 %v101
    %v118 = vunpack.c.l.bf16 %v102
    %v119 = vunpack.c.l.bf16 %v103
    %v120 = vunpack.c.l.bf16 %v104
    %v121 = vld [vmem:[#allocation7] sm:$0x1]
    %v123 = vperm.slane %v121, 0
    %v125 = vmul.f32 %v105, %v123
    %v126 = vmul.f32 %v106, %v123
    %v127 = vmul.f32 %v107, %v123
    %v128 = vmul.f32 %v108, %v123
    %v129 = vmul.f32 %v109, %v123
    %v130 = vmul.f32 %v110, %v123
    %v131 = vmul.f32 %v111, %v123
    %v132 = vmul.f32 %v112, %v123
    %v133 = vmul.f32 %v113, %v123
    %v134 = vmul.f32 %v114, %v123
    %v135 = vmul.f32 %v115, %v123
    %v136 = vmul.f32 %v116, %v123
    %v137 = vmul.f32 %v117, %v123
    %v138 = vmul.f32 %v118, %v123
    %v139 = vmul.f32 %v119, %v123
    %v140 = vmul.f32 %v120, %v123
    %v141 = vld [vmem:[%s2] sm:$0x1]
    %v143 = vperm.slane %v141, 0
    %v145 = vadd.f32 %v125, %v143
    %v146 = vadd.f32 %v126, %v143
    %v147 = vadd.f32 %v127, %v143
    %v148 = vadd.f32 %v128, %v143
    %v149 = vadd.f32 %v129, %v143
    %v150 = vadd.f32 %v130, %v143
    %v151 = vadd.f32 %v131, %v143
    %v152 = vadd.f32 %v132, %v143
    %v153 = vadd.f32 %v133, %v143
    %v154 = vadd.f32 %v134, %v143
    %v155 = vadd.f32 %v135, %v143
    %v156 = vadd.f32 %v136, %v143
    %v157 = vadd.f32 %v137, %v143
    %v158 = vadd.f32 %v138, %v143
    %v159 = vadd.f32 %v139, %v143
    %v160 = vadd.f32 %v140, %v143
    %v161 = vmax.f32 %v145, 0.0
    %v162 = vmax.f32 %v146, 0.0
    %v163 = vmax.f32 %v147, 0.0
    %v164 = vmax.f32 %v148, 0.0
    %v165 = vmax.f32 %v149, 0.0
    %v166 = vmax.f32 %v150, 0.0
    %v167 = vmax.f32 %v151, 0.0
    %v168 = vmax.f32 %v152, 0.0
    %v169 = vmax.f32 %v153, 0.0
    %v170 = vmax.f32 %v154, 0.0
    %v171 = vmax.f32 %v155, 0.0
    %v172 = vmax.f32 %v156, 0.0
    %v173 = vmax.f32 %v157, 0.0
    %v174 = vmax.f32 %v158, 0.0
    %v175 = vmax.f32 %v159, 0.0
    %v176 = vmax.f32 %v160, 0.0
    %v177 = vpack.c.bf16 %v161, %v161
    %v178 = vpack.c.bf16 %v162, %v162
    %v179 = vpack.c.bf16 %v163, %v163
    %v180 = vpack.c.bf16 %v164, %v164
    %v181 = vpack.c.bf16 %v165, %v165
    %v182 = vpack.c.bf16 %v166, %v166
    %v183 = vpack.c.bf16 %v167, %v167
    %v184 = vpack.c.bf16 %v168, %v168
    %v185 = vpack.c.bf16 %v169, %v169
    %v186 = vpack.c.bf16 %v170, %v170
    %v187 = vpack.c.bf16 %v171, %v171
    %v188 = vpack.c.bf16 %v172, %v172
    %v189 = vpack.c.bf16 %v173, %v173
    %v190 = vpack.c.bf16 %v174, %v174
    %v191 = vpack.c.bf16 %v175, %v175
    %v192 = vpack.c.bf16 %v176, %v176
    %v209 = vrot.slane %v177, 3
    %v210 = vrot.slane %v178, 3
    %v211 = vrot.slane %v179, 3
    %v212 = vrot.slane %v180, 3
    %v213 = vrot.slane %v181, 3
    %v214 = vrot.slane %v182, 3
    %v215 = vrot.slane %v183, 3
    %v216 = vrot.slane %v184, 3
    %v217 = vrot.slane %v185, 3
    %v218 = vrot.slane %v186, 3
    %v219 = vrot.slane %v187, 3
    %v220 = vrot.slane %v188, 3
    %v221 = vrot.slane %v189, 3
    %v222 = vrot.slane %v190, 3
    %v223 = vrot.slane %v191, 3
    %v224 = vrot.slane %v192, 3
    %vm225 = vcmask 1040384
    %v228 = vsel %vm225, %v177, %v209
    %v232 = vsel %vm225, %v178, %v210
    %v236 = vsel %vm225, %v179, %v211
    %v240 = vsel %vm225, %v180, %v212
    %v244 = vsel %vm225, %v181, %v213
    %v248 = vsel %vm225, %v182, %v214
    %v252 = vsel %vm225, %v183, %v215
    %v256 = vsel %vm225, %v184, %v216
    %v260 = vsel %vm225, %v185, %v217
    %v264 = vsel %vm225, %v186, %v218
    %v268 = vsel %vm225, %v187, %v219
    %v272 = vsel %vm225, %v188, %v220
    %v276 = vsel %vm225, %v189, %v221
    %v280 = vsel %vm225, %v190, %v222
    %v284 = vsel %vm225, %v191, %v223
    %v288 = vsel %vm225, %v192, %v224
    %290 = vrot.lane.b32.xlu0 %v228, 64
    %v291 = vpop.permute.xlu0 %290
    %292 = vrot.lane.b32.xlu0 %v232, 64
    %v293 = vpop.permute.xlu0 %292
    %294 = vrot.lane.b32.xlu0 %v236, 64
    %v295 = vpop.permute.xlu0 %294
    %296 = vrot.lane.b32.xlu0 %v240, 64
    %v297 = vpop.permute.xlu0 %296
    %298 = vrot.lane.b32.xlu0 %v244, 64
    %v299 = vpop.permute.xlu0 %298
    %300 = vrot.lane.b32.xlu0 %v248, 64
    %v301 = vpop.permute.xlu0 %300
    %302 = vrot.lane.b32.xlu0 %v252, 64
    %v303 = vpop.permute.xlu0 %302
    %304 = vrot.lane.b32.xlu0 %v256, 64
    %v305 = vpop.permute.xlu0 %304
    %306 = vrot.lane.b32.xlu0 %v260, 64
    %v307 = vpop.permute.xlu0 %306
    %308 = vrot.lane.b32.xlu0 %v264, 64
    %v309 = vpop.permute.xlu0 %308
    %310 = vrot.lane.b32.xlu0 %v268, 64
    %v311 = vpop.permute.xlu0 %310
    %312 = vrot.lane.b32.xlu0 %v272, 64
    %v313 = vpop.permute.xlu0 %312
    %314 = vrot.lane.b32.xlu0 %v276, 64
    %v315 = vpop.permute.xlu0 %314
    %316 = vrot.lane.b32.xlu0 %v280, 64
    %v317 = vpop.permute.xlu0 %316
    %318 = vrot.lane.b32.xlu0 %v284, 64
    %v319 = vpop.permute.xlu0 %318
    %320 = vrot.lane.b32.xlu0 %v288, 64
    %v321 = vpop.permute.xlu0 %320
    %vm338 = vcmask 1040896
    %339 = vst.msk [vmem:[#allocation2] sm:$0x1] %vm338, %v291
    %340 = vst.msk [vmem:[#allocation2 + $0x2] sm:$0x1] %vm338, %v293
    %341 = vst.msk [vmem:[#allocation2 + $0x4] sm:$0x1] %vm338, %v295
    %342 = vst.msk [vmem:[#allocation2 + $0x6] sm:$0x1] %vm338, %v297
    %343 = vst.msk [vmem:[#allocation2 + $0x8] sm:$0x1] %vm338, %v299
    %344 = vst.msk [vmem:[#allocation2 + $0xa] sm:$0x1] %vm338, %v301
    %345 = vst.msk [vmem:[#allocation2 + $0xc] sm:$0x1] %vm338, %v303
    %346 = vst.msk [vmem:[#allocation2 + $0xe] sm:$0x1] %vm338, %v305
    %347 = vst.msk [vmem:[#allocation2 + $0x10] sm:$0x1] %vm338, %v307
    %348 = vst.msk [vmem:[#allocation2 + $0x12] sm:$0x1] %vm338, %v309
    %349 = vst.msk [vmem:[#allocation2 + $0x14] sm:$0x1] %vm338, %v311
    %350 = vst.msk [vmem:[#allocation2 + $0x16] sm:$0x1] %vm338, %v313
    %351 = vst.msk [vmem:[#allocation2 + $0x18] sm:$0x1] %vm338, %v315
    %352 = vst.msk [vmem:[#allocation2 + $0x1a] sm:$0x1] %vm338, %v317
    %353 = vst.msk [vmem:[#allocation2 + $0x1c] sm:$0x1] %vm338, %v319
    %354 = vst.msk [vmem:[#allocation2 + $0x1e] sm:$0x1] %vm338, %v321
    %vm355 = vcmask 516096
    %356 = vst.msk [vmem:[#allocation2] sm:$0x1] %vm355, 0
    %s357 = scalar_lea.vmem [#allocation2], 2
    %358 = vst.msk [vmem:[%s357] sm:$0x1] %vm355, %v177
    %359 = vst.msk [vmem:[%s357 + $0x2] sm:$0x1] %vm355, %v178
    %360 = vst.msk [vmem:[%s357 + $0x4] sm:$0x1] %vm355, %v179
    %361 = vst.msk [vmem:[%s357 + $0x6] sm:$0x1] %vm355, %v180
    %362 = vst.msk [vmem:[%s357 + $0x8] sm:$0x1] %vm355, %v181
    %363 = vst.msk [vmem:[%s357 + $0xa] sm:$0x1] %vm355, %v182
    %364 = vst.msk [vmem:[%s357 + $0xc] sm:$0x1] %vm355, %v183
    %365 = vst.msk [vmem:[%s357 + $0xe] sm:$0x1] %vm355, %v184
    %366 = vst.msk [vmem:[%s357 + $0x10] sm:$0x1] %vm355, %v185
    %367 = vst.msk [vmem:[%s357 + $0x12] sm:$0x1] %vm355, %v186
    %368 = vst.msk [vmem:[%s357 + $0x14] sm:$0x1] %vm355, %v187
    %369 = vst.msk [vmem:[%s357 + $0x16] sm:$0x1] %vm355, %v188
    %370 = vst.msk [vmem:[%s357 + $0x18] sm:$0x1] %vm355, %v189
    %371 = vst.msk [vmem:[%s357 + $0x1a] sm:$0x1] %vm355, %v190
    %372 = vst.msk [vmem:[%s357 + $0x1c] sm:$0x1] %vm355, %v191
    %373 = vst.msk [vmem:[#allocation2 + $0x1] sm:$0x1] %vm355, %v178
    %374 = vst.msk [vmem:[#allocation2 + $0x3] sm:$0x1] %vm355, %v179
    %375 = vst.msk [vmem:[#allocation2 + $0x5] sm:$0x1] %vm355, %v180
    %376 = vst.msk [vmem:[#allocation2 + $0x7] sm:$0x1] %vm355, %v181
    %377 = vst.msk [vmem:[#allocation2 + $0x9] sm:$0x1] %vm355, %v182
    %378 = vst.msk [vmem:[#allocation2 + $0xb] sm:$0x1] %vm355, %v183
    %379 = vst.msk [vmem:[#allocation2 + $0xd] sm:$0x1] %vm355, %v184
    %380 = vst.msk [vmem:[#allocation2 + $0xf] sm:$0x1] %vm355, %v185
    %381 = vst.msk [vmem:[#allocation2 + $0x11] sm:$0x1] %vm355, %v186
    %382 = vst.msk [vmem:[#allocation2 + $0x13] sm:$0x1] %vm355, %v187
    %383 = vst.msk [vmem:[#allocation2 + $0x15] sm:$0x1] %vm355, %v188
    %384 = vst.msk [vmem:[#allocation2 + $0x17] sm:$0x1] %vm355, %v189
    %385 = vst.msk [vmem:[#allocation2 + $0x19] sm:$0x1] %vm355, %v190
    %386 = vst.msk [vmem:[#allocation2 + $0x1b] sm:$0x1] %vm355, %v191
    %387 = vst.msk [vmem:[#allocation2 + $0x1d] sm:$0x1] %vm355, %v192
    %s388 = scalar_lea.vmem [#allocation2], 30
    %389 = vst.msk [vmem:[%s388 + $0x1] sm:$0x1] %vm355, 0
    %v390 = vld [vmem:[#allocation2] sm:$0x3]
    %v391 = vld [vmem:[#allocation2 + $0x2] sm:$0x3]
    %v392 = vld [vmem:[#allocation2 + $0x4] sm:$0x3]
    %v393 = vld [vmem:[#allocation2 + $0x6] sm:$0x3]
    %v394 = vld [vmem:[#allocation2 + $0x8] sm:$0x3]
    %v395 = vld [vmem:[#allocation2 + $0xa] sm:$0x3]
    %v396 = vld [vmem:[#allocation2 + $0xc] sm:$0x3]
    %v397 = vld [vmem:[#allocation2 + $0xe] sm:$0x3]
    %v398 = vld [vmem:[#allocation2 + $0x10] sm:$0x3]
    %v399 = vld [vmem:[#allocation2 + $0x12] sm:$0x3]
    %v400 = vld [vmem:[#allocation2 + $0x14] sm:$0x3]
    %v401 = vld [vmem:[#allocation2 + $0x16] sm:$0x3]
    %v402 = vld [vmem:[#allocation2 + $0x18] sm:$0x3]
    %v403 = vld [vmem:[#allocation2 + $0x1a] sm:$0x3]
    %v404 = vld [vmem:[#allocation2 + $0x1c] sm:$0x3]
    %v405 = vld [vmem:[#allocation2 + $0x1e] sm:$0x3]
    %v406 = vld [vmem:[#allocation9] sm:$0xff]
    %v407 = vld [vmem:[#allocation9 + $0x8] sm:$0xff]
    %v408 = vld [vmem:[#allocation9 + $0x10] sm:$0xff]
    %v409 = vld [vmem:[#allocation9 + $0x18] sm:$0xff]
    %v410 = vld [vmem:[#allocation9 + $0x20] sm:$0xff]
    %v411 = vld [vmem:[#allocation9 + $0x28] sm:$0xff]
    %v412 = vld [vmem:[#allocation9 + $0x30] sm:$0xff]
    %v413 = vld [vmem:[#allocation9 + $0x38] sm:$0xff]
    %v414 = vld [vmem:[#allocation9 + $0x40] sm:$0xff]
    %v415 = vld [vmem:[#allocation9 + $0x48] sm:$0xff]
    %v416 = vld [vmem:[#allocation9 + $0x50] sm:$0xff]
    %v417 = vld [vmem:[#allocation9 + $0x58] sm:$0xff]
    %v418 = vld [vmem:[#allocation9 + $0x60] sm:$0xff]
    %v419 = vld [vmem:[#allocation9 + $0x68] sm:$0xff]
    %v420 = vld [vmem:[#allocation9 + $0x70] sm:$0xff]
    %v421 = vld [vmem:[#allocation9 + $0x78] sm:$0xff]
    %v422 = vld [vmem:[#allocation9 + $0x80] sm:$0xff]
    %v423 = vld [vmem:[#allocation9 + $0x88] sm:$0xff]
    %v424 = vld [vmem:[#allocation9 + $0x90] sm:$0xff]
    %v425 = vld [vmem:[#allocation9 + $0x98] sm:$0xff]
    %v426 = vld [vmem:[#allocation9 + $0xa0] sm:$0xff]
    %v427 = vld [vmem:[#allocation9 + $0xa8] sm:$0xff]
    %v428 = vld [vmem:[#allocation9 + $0xb0] sm:$0xff]
    %v429 = vld [vmem:[#allocation9 + $0xb8] sm:$0xff]
    %431 = vst [vmem:[#allocation1] ss:$9 sm:$0xff] %v390
    %s433 = scalar_lea.vmem [#allocation1], 1
    %434 = vst [vmem:[%s433] ss:$9 sm:$0xff] %v391
    %s436 = scalar_lea.vmem [#allocation1], 2
    %437 = vst [vmem:[%s436] ss:$9 sm:$0xff] %v392
    %s439 = scalar_lea.vmem [#allocation1], 3
    %440 = vst [vmem:[%s439] ss:$9 sm:$0xff] %v393
    %s442 = scalar_lea.vmem [#allocation1], 4
    %443 = vst [vmem:[%s442] ss:$9 sm:$0xff] %v394
    %s445 = scalar_lea.vmem [#allocation1], 5
    %446 = vst [vmem:[%s445] ss:$9 sm:$0xff] %v395
    %s448 = scalar_lea.vmem [#allocation1], 6
    %449 = vst [vmem:[%s448] ss:$9 sm:$0xff] %v396
    %s451 = scalar_lea.vmem [#allocation1], 7
    %452 = vst [vmem:[%s451] ss:$9 sm:$0xff] %v397
    %v453 = vld [vmem:[#allocation1] sm:$0xff]
    %v454 = vld [vmem:[#allocation1 + $0x9] sm:$0xff]
    %456 = vst [vmem:[#allocation1] ss:$9 sm:$0xff] %v398
    %458 = vst [vmem:[%s433] ss:$9 sm:$0xff] %v399
    %460 = vst [vmem:[%s436] ss:$9 sm:$0xff] %v400
    %462 = vst [vmem:[%s439] ss:$9 sm:$0xff] %v401
    %464 = vst [vmem:[%s442] ss:$9 sm:$0xff] %v402
    %466 = vst [vmem:[%s445] ss:$9 sm:$0xff] %v403
    %468 = vst [vmem:[%s448] ss:$9 sm:$0xff] %v404
    %470 = vst [vmem:[%s451] ss:$9 sm:$0xff] %v405
    %v471 = vld [vmem:[#allocation1] sm:$0xff]
    %v472 = vld [vmem:[#allocation1 + $0x9] sm:$0xff]
    %v499 = vunpack.c.l.b16 %v406
    %v500 = vunpack.c.h.b16 %v406
    %v501 = vunpack.c.l.b16 %v407
    %v502 = vunpack.c.h.b16 %v407
    %v503 = vunpack.c.l.b16 %v408
    %v504 = vunpack.c.h.b16 %v408
    %v505 = vunpack.c.l.b16 %v409
    %v506 = vunpack.c.h.b16 %v409
    %v507 = vunpack.c.l.b16 %v410
    %v508 = vunpack.c.h.b16 %v410
    %v509 = vunpack.c.l.b16 %v411
    %v510 = vunpack.c.h.b16 %v411
    %v511 = vunpack.c.l.b16 %v412
    %v512 = vunpack.c.h.b16 %v412
    %v513 = vunpack.c.l.b16 %v413
    %v514 = vunpack.c.h.b16 %v413
    %v515 = vunpack.c.l.b16 %v414
    %v516 = vunpack.c.h.b16 %v414
    %v517 = vunpack.c.l.b16 %v415
    %v518 = vunpack.c.h.b16 %v415
    %v519 = vunpack.c.l.b16 %v416
    %v520 = vunpack.c.h.b16 %v416
    %v521 = vunpack.c.l.b16 %v417
    %v522 = vunpack.c.h.b16 %v417
    %v523 = vunpack.c.l.b16 %v418
    %v524 = vunpack.c.h.b16 %v418
    %v525 = vunpack.c.l.b16 %v419
    %v526 = vunpack.c.h.b16 %v419
    %v527 = vunpack.c.l.b16 %v420
    %v528 = vunpack.c.h.b16 %v420
    %v529 = vunpack.c.l.b16 %v421
    %v530 = vunpack.c.h.b16 %v421
    %v531 = vunpack.c.l.b16 %v422
    %v532 = vunpack.c.h.b16 %v422
    %v533 = vunpack.c.l.b16 %v423
    %v534 = vunpack.c.h.b16 %v423
    %v535 = vunpack.c.l.b16 %v424
    %v536 = vunpack.c.h.b16 %v424
    %v537 = vunpack.c.l.b16 %v425
    %v538 = vunpack.c.h.b16 %v425
    %v539 = vunpack.c.l.b16 %v426
    %v540 = vunpack.c.h.b16 %v426
    %v541 = vunpack.c.l.b16 %v427
    %v542 = vunpack.c.h.b16 %v427
    %v543 = vunpack.c.l.b16 %v428
    %v544 = vunpack.c.h.b16 %v428
    %v545 = vunpack.c.l.b16 %v429
    %v546 = vunpack.c.h.b16 %v429
    %v547 = vpack.c.b16 %v501, %v499
    %v548 = vpack.c.b16 %v502, %v500
    %v549 = vpack.c.b16 %v505, %v503
    %v550 = vpack.c.b16 %v506, %v504
    %v551 = vpack.c.b16 %v509, %v507
    %v552 = vpack.c.b16 %v510, %v508
    %v553 = vpack.c.b16 %v513, %v511
    %v554 = vpack.c.b16 %v514, %v512
    %v555 = vpack.c.b16 %v517, %v515
    %v556 = vpack.c.b16 %v518, %v516
    %v557 = vpack.c.b16 %v521, %v519
    %v558 = vpack.c.b16 %v522, %v520
    %v559 = vpack.c.b16 %v525, %v523
    %v560 = vpack.c.b16 %v526, %v524
    %v561 = vpack.c.b16 %v529, %v527
    %v562 = vpack.c.b16 %v530, %v528
    %v563 = vpack.c.b16 %v533, %v531
    %v564 = vpack.c.b16 %v534, %v532
    %v565 = vpack.c.b16 %v537, %v535
    %v566 = vpack.c.b16 %v538, %v536
    %v567 = vpack.c.b16 %v541, %v539
    %v568 = vpack.c.b16 %v542, %v540
    %v569 = vpack.c.b16 %v545, %v543
    %v570 = vpack.c.b16 %v546, %v544
    %vm595 = vcmask 523264
    %v596 = vsel %vm595, %v454, 0
    %v598 = vsel %vm595, %v472, 0
    %600 = vmatpush.bf16.msra.mxu0 %v561
    %601 = vmatpush.bf16.msra.mxu0 %v559
    %602 = vmatpush.bf16.msra.mxu0 %v557
    %603 = vmatpush.bf16.msra.mxu0 %v555
    %604 = vmatpush.bf16.msra.mxu0 %v553
    %605 = vmatpush.bf16.msra.mxu0 %v551
    %606 = vmatpush.bf16.msra.mxu0 %v549
    %607 = vmatpush.bf16.msra.mxu0 %v547
    %608 = vmatmul.bf16.gmra.mxu0 %v453
    %v609 = vpop.f32.mrf.mxu0
    %v610 = vadd.f32 0.0, %v609
    %v611 = vpop.f32.mrf.mxu0
    %v612 = vadd.f32 0.0, %v611
    %613 = vmatmul.bf16.gmra.mxu0 %v471
    %v614 = vpop.f32.mrf.mxu0
    %v615 = vadd.f32 0.0, %v614
    %v616 = vpop.f32.mrf.mxu0
    %v617 = vadd.f32 0.0, %v616
    %618 = vdwg.mxu0
    %619 = vmatpush.bf16.msra.mxu0 0
    %620 = vmatpush.bf16.msra.mxu0 0
    %621 = vmatpush.bf16.msra.mxu0 0
    %622 = vmatpush.bf16.msra.mxu0 0
    %623 = vmatpush.bf16.msra.mxu0 %v569
    %624 = vmatpush.bf16.msra.mxu0 %v567
    %625 = vmatpush.bf16.msra.mxu0 %v565
    %626 = vmatpush.bf16.msra.mxu0 %v563
    %627 = vmatmul.bf16.gmra.mxu0 %v596
    %v628 = vpop.f32.mrf.mxu0
    %v629 = vadd.f32 %v610, %v628
    %v630 = vpop.f32.mrf.mxu0
    %v631 = vadd.f32 %v612, %v630
    %632 = vmatmul.bf16.gmra.mxu0 %v598
    %v633 = vpop.f32.mrf.mxu0
    %v634 = vadd.f32 %v615, %v633
    %v635 = vpop.f32.mrf.mxu0
    %v636 = vadd.f32 %v617, %v635
    %637 = vdwg.mxu0
    %638 = vmatpush.bf16.msra.mxu0 %v562
    %639 = vmatpush.bf16.msra.mxu0 %v560
    %640 = vmatpush.bf16.msra.mxu0 %v558
    %641 = vmatpush.bf16.msra.mxu0 %v556
    %642 = vmatpush.bf16.msra.mxu0 %v554
    %643 = vmatpush.bf16.msra.mxu0 %v552
    %644 = vmatpush.bf16.msra.mxu0 %v550
    %645 = vmatpush.bf16.msra.mxu0 %v548
    %646 = vmatmul.bf16.gmra.mxu0 %v453
    %v647 = vpop.f32.mrf.mxu0
    %v648 = vadd.f32 0.0, %v647
    %v649 = vpop.f32.mrf.mxu0
    %v650 = vadd.f32 0.0, %v649
    %651 = vmatmul.bf16.gmra.mxu0 %v471
    %v652 = vpop.f32.mrf.mxu0
    %v653 = vadd.f32 0.0, %v652
    %v654 = vpop.f32.mrf.mxu0
    %v655 = vadd.f32 0.0, %v654
    %656 = vdwg.mxu0
    %657 = vmatpush.bf16.msra.mxu0 0
    %658 = vmatpush.bf16.msra.mxu0 0
    %659 = vmatpush.bf16.msra.mxu0 0
    %660 = vmatpush.bf16.msra.mxu0 0
    %661 = vmatpush.bf16.msra.mxu0 %v570
    %662 = vmatpush.bf16.msra.mxu0 %v568
    %663 = vmatpush.bf16.msra.mxu0 %v566
    %664 = vmatpush.bf16.msra.mxu0 %v564
    %665 = vmatmul.bf16.gmra.mxu0 %v596
    %v666 = vpop.f32.mrf.mxu0
    %v667 = vadd.f32 %v648, %v666
    %v668 = vpop.f32.mrf.mxu0
    %v669 = vadd.f32 %v650, %v668
    %670 = vmatmul.bf16.gmra.mxu0 %v598
    %v671 = vpop.f32.mrf.mxu0
    %v672 = vadd.f32 %v653, %v671
    %v673 = vpop.f32.mrf.mxu0
    %v674 = vadd.f32 %v655, %v673
    %675 = vdwg.mxu0
    %v676 = vld [vmem:[%s4] sm:$0x1]
    %v678 = vperm.slane %v676, 0
    %v680 = vmul.f32 %v629, %v678
    %v681 = vmul.f32 %v631, %v678
    %v682 = vmul.f32 %v634, %v678
    %v683 = vmul.f32 %v636, %v678
    %v684 = vld [vmem:[%s5] sm:$0x1]
    %v686 = vperm.slane %v684, 0
    %v688 = vadd.f32 %v680, %v686
    %v689 = vadd.f32 %v681, %v686
    %v690 = vadd.f32 %v682, %v686
    %v691 = vadd.f32 %v683, %v686
    %v692 = vmax.f32 %v688, 0.0
    %v693 = vmax.f32 %v689, 0.0
    %v694 = vmax.f32 %v690, 0.0
    %v695 = vmax.f32 %v691, 0.0
    %v696 = vpack.c.bf16 %v692, %v692
    %v697 = vpack.c.bf16 %v693, %v693
    %v698 = vpack.c.bf16 %v694, %v694
    %v699 = vpack.c.bf16 %v695, %v695
    %v704 = vrot.slane %v696, 3
    %v705 = vrot.slane %v697, 3
    %v706 = vrot.slane %v698, 3
    %v707 = vrot.slane %v699, 3
    %v710 = vsel %vm225, %v696, %v704
    %vm711 = vcmask 1041409
    %v712 = vsel %vm711, %v696, %v704
    %v714 = vrot.slane %v712, 1
    %vm715 = vcmask 1042434
    %v716 = vsel %vm715, %v696, %v704
    %v718 = vrot.slane %v716, 2
    %vm719 = vcmask 1043459
    %v720 = vsel %vm719, %v696, %v704
    %v722 = vrot.slane %v720, 3
    %v725 = vsel %vm225, %v697, %v705
    %v726 = vsel %vm711, %v697, %v705
    %v728 = vrot.slane %v726, 1
    %v729 = vsel %vm715, %v697, %v705
    %v731 = vrot.slane %v729, 2
    %v732 = vsel %vm719, %v697, %v705
    %v734 = vrot.slane %v732, 3
    %v737 = vsel %vm225, %v698, %v706
    %v738 = vsel %vm711, %v698, %v706
    %v740 = vrot.slane %v738, 1
    %v741 = vsel %vm715, %v698, %v706
    %v743 = vrot.slane %v741, 2
    %v744 = vsel %vm719, %v698, %v706
    %v746 = vrot.slane %v744, 3
    %v749 = vsel %vm225, %v699, %v707
    %v750 = vsel %vm711, %v699, %v707
    %v752 = vrot.slane %v750, 1
    %v753 = vsel %vm715, %v699, %v707
    %v755 = vrot.slane %v753, 2
    %v756 = vsel %vm719, %v699, %v707
    %v758 = vrot.slane %v756, 3
    %775 = vst [vmem:[#allocation3 + $0x1] sm:$0x1] %v710
    %776 = vst [vmem:[#allocation3 + $0x4] sm:$0x1] %v714
    %777 = vst [vmem:[#allocation3 + $0x7] sm:$0x1] %v718
    %778 = vst [vmem:[#allocation3 + $0xa] sm:$0x1] %v722
    %779 = vst [vmem:[#allocation3 + $0xd] sm:$0x1] %v725
    %780 = vst [vmem:[#allocation3 + $0x10] sm:$0x1] %v728
    %781 = vst [vmem:[#allocation3 + $0x13] sm:$0x1] %v731
    %782 = vst [vmem:[#allocation3 + $0x16] sm:$0x1] %v734
    %783 = vst [vmem:[#allocation3 + $0x19] sm:$0x1] %v737
    %784 = vst [vmem:[#allocation3 + $0x1c] sm:$0x1] %v740
    %785 = vst [vmem:[#allocation3 + $0x1f] sm:$0x1] %v743
    %786 = vst [vmem:[#allocation3 + $0x22] sm:$0x1] %v746
    %787 = vst [vmem:[#allocation3 + $0x25] sm:$0x1] %v749
    %788 = vst [vmem:[#allocation3 + $0x28] sm:$0x1] %v752
    %789 = vst [vmem:[#allocation3 + $0x2b] sm:$0x1] %v755
    %790 = vst [vmem:[#allocation3 + $0x2e] sm:$0x1] %v758
    %791 = vst [vmem:[#allocation3] sm:$0x1] 0
    %s792 = scalar_lea.vmem [#allocation3], 3
    %793 = vst [vmem:[%s792] sm:$0x1] %v710
    %794 = vst [vmem:[%s792 + $0x3] sm:$0x1] %v714
    %795 = vst [vmem:[%s792 + $0x6] sm:$0x1] %v718
    %796 = vst [vmem:[%s792 + $0x9] sm:$0x1] %v722
    %797 = vst [vmem:[%s792 + $0xc] sm:$0x1] %v725
    %798 = vst [vmem:[%s792 + $0xf] sm:$0x1] %v728
    %799 = vst [vmem:[%s792 + $0x12] sm:$0x1] %v731
    %800 = vst [vmem:[%s792 + $0x15] sm:$0x1] %v734
    %801 = vst [vmem:[%s792 + $0x18] sm:$0x1] %v737
    %802 = vst [vmem:[%s792 + $0x1b] sm:$0x1] %v740
    %803 = vst [vmem:[%s792 + $0x1e] sm:$0x1] %v743
    %804 = vst [vmem:[%s792 + $0x21] sm:$0x1] %v746
    %805 = vst [vmem:[%s792 + $0x24] sm:$0x1] %v749
    %806 = vst [vmem:[%s792 + $0x27] sm:$0x1] %v752
    %807 = vst [vmem:[%s792 + $0x2a] sm:$0x1] %v755
    %808 = vst [vmem:[#allocation3 + $0x2] sm:$0x1] %v714
    %809 = vst [vmem:[#allocation3 + $0x5] sm:$0x1] %v718
    %810 = vst [vmem:[#allocation3 + $0x8] sm:$0x1] %v722
    %811 = vst [vmem:[#allocation3 + $0xb] sm:$0x1] %v725
    %812 = vst [vmem:[#allocation3 + $0xe] sm:$0x1] %v728
    %813 = vst [vmem:[#allocation3 + $0x11] sm:$0x1] %v731
    %814 = vst [vmem:[#allocation3 + $0x14] sm:$0x1] %v734
    %815 = vst [vmem:[#allocation3 + $0x17] sm:$0x1] %v737
    %816 = vst [vmem:[#allocation3 + $0x1a] sm:$0x1] %v740
    %817 = vst [vmem:[#allocation3 + $0x1d] sm:$0x1] %v743
    %818 = vst [vmem:[#allocation3 + $0x20] sm:$0x1] %v746
    %819 = vst [vmem:[#allocation3 + $0x23] sm:$0x1] %v749
    %820 = vst [vmem:[#allocation3 + $0x26] sm:$0x1] %v752
    %821 = vst [vmem:[#allocation3 + $0x29] sm:$0x1] %v755
    %822 = vst [vmem:[#allocation3 + $0x2c] sm:$0x1] %v758
    %s823 = scalar_lea.vmem [#allocation3], 45
    %824 = vst [vmem:[%s823 + $0x2] sm:$0x1] 0
    %v825 = vld [vmem:[#allocation3] sm:$0x7]
    %v826 = vld [vmem:[#allocation3 + $0x3] sm:$0x7]
    %v827 = vld [vmem:[#allocation3 + $0x6] sm:$0x7]
    %v828 = vld [vmem:[#allocation3 + $0x9] sm:$0x7]
    %v829 = vld [vmem:[#allocation3 + $0xc] sm:$0x7]
    %v830 = vld [vmem:[#allocation3 + $0xf] sm:$0x7]
    %v831 = vld [vmem:[#allocation3 + $0x12] sm:$0x7]
    %v832 = vld [vmem:[#allocation3 + $0x15] sm:$0x7]
    %v833 = vld [vmem:[#allocation3 + $0x18] sm:$0x7]
    %v834 = vld [vmem:[#allocation3 + $0x1b] sm:$0x7]
    %v835 = vld [vmem:[#allocation3 + $0x1e] sm:$0x7]
    %v836 = vld [vmem:[#allocation3 + $0x21] sm:$0x7]
    %v837 = vld [vmem:[#allocation3 + $0x24] sm:$0x7]
    %v838 = vld [vmem:[#allocation3 + $0x27] sm:$0x7]
    %v839 = vld [vmem:[#allocation3 + $0x2a] sm:$0x7]
    %v840 = vld [vmem:[#allocation3 + $0x2d] sm:$0x7]
    %v841 = vld [vmem:[#allocation10] sm:$0xf]
    %v842 = vld [vmem:[#allocation10 + $0x4] sm:$0xf]
    %v843 = vld [vmem:[#allocation10 + $0x8] sm:$0xf]
    %v844 = vld [vmem:[#allocation10 + $0xc] sm:$0xf]
    %v845 = vld [vmem:[#allocation10 + $0x10] sm:$0xf]
    %v846 = vld [vmem:[#allocation10 + $0x14] sm:$0xf]
    %v847 = vld [vmem:[#allocation10 + $0x18] sm:$0xf]
    %v848 = vld [vmem:[#allocation10 + $0x1c] sm:$0xf]
    %v849 = vld [vmem:[#allocation10 + $0x20] sm:$0xf]
    %v850 = vld [vmem:[#allocation10 + $0x24] sm:$0xf]
    %v851 = vld [vmem:[#allocation10 + $0x28] sm:$0xf]
    %v852 = vld [vmem:[#allocation10 + $0x2c] sm:$0xf]
    %v853 = vld [vmem:[#allocation10 + $0x30] sm:$0xf]
    %v854 = vld [vmem:[#allocation10 + $0x34] sm:$0xf]
    %v855 = vld [vmem:[#allocation10 + $0x38] sm:$0xf]
    %v856 = vld [vmem:[#allocation10 + $0x3c] sm:$0xf]
    %v857 = vld [vmem:[#allocation10 + $0x40] sm:$0xf]
    %v858 = vld [vmem:[#allocation10 + $0x44] sm:$0xf]
    %v859 = vld [vmem:[#allocation10 + $0x48] sm:$0xf]
    %v860 = vld [vmem:[#allocation10 + $0x4c] sm:$0xf]
    %v861 = vld [vmem:[#allocation10 + $0x50] sm:$0xf]
    %v862 = vld [vmem:[#allocation10 + $0x54] sm:$0xf]
    %v863 = vld [vmem:[#allocation10 + $0x58] sm:$0xf]
    %v864 = vld [vmem:[#allocation10 + $0x5c] sm:$0xf]
    %v865 = vld [vmem:[#allocation10 + $0x60] sm:$0xf]
    %v866 = vld [vmem:[#allocation10 + $0x64] sm:$0xf]
    %v867 = vld [vmem:[#allocation10 + $0x68] sm:$0xf]
    %v868 = vld [vmem:[#allocation10 + $0x6c] sm:$0xf]
    %v869 = vld [vmem:[#allocation10 + $0x70] sm:$0xf]
    %v870 = vld [vmem:[#allocation10 + $0x74] sm:$0xf]
    %v871 = vld [vmem:[#allocation10 + $0x78] sm:$0xf]
    %v872 = vld [vmem:[#allocation10 + $0x7c] sm:$0xf]
    %v873 = vld [vmem:[#allocation10 + $0x80] sm:$0xf]
    %v874 = vld [vmem:[#allocation10 + $0x84] sm:$0xf]
    %v875 = vld [vmem:[#allocation10 + $0x88] sm:$0xf]
    %v876 = vld [vmem:[#allocation10 + $0x8c] sm:$0xf]
    %v877 = vld [vmem:[#allocation10 + $0x90] sm:$0xf]
    %v878 = vld [vmem:[#allocation10 + $0x94] sm:$0xf]
    %v879 = vld [vmem:[#allocation10 + $0x98] sm:$0xf]
    %v880 = vld [vmem:[#allocation10 + $0x9c] sm:$0xf]
    %v881 = vld [vmem:[#allocation10 + $0xa0] sm:$0xf]
    %v882 = vld [vmem:[#allocation10 + $0xa4] sm:$0xf]
    %v883 = vld [vmem:[#allocation10 + $0xa8] sm:$0xf]
    %v884 = vld [vmem:[#allocation10 + $0xac] sm:$0xf]
    %v885 = vld [vmem:[#allocation10 + $0xb0] sm:$0xf]
    %v886 = vld [vmem:[#allocation10 + $0xb4] sm:$0xf]
    %v887 = vld [vmem:[#allocation10 + $0xb8] sm:$0xf]
    %v888 = vld [vmem:[#allocation10 + $0xbc] sm:$0xf]
    %890 = vst [vmem:[#allocation1] ss:$9 sm:$0xff] %v825
    %s892 = scalar_lea.vmem [#allocation1], 1
    %893 = vst [vmem:[%s892] ss:$9 sm:$0xff] %v826
    %s895 = scalar_lea.vmem [#allocation1], 2
    %896 = vst [vmem:[%s895] ss:$9 sm:$0xff] %v827
    %s898 = scalar_lea.vmem [#allocation1], 3
    %899 = vst [vmem:[%s898] ss:$9 sm:$0xff] %v828
    %s901 = scalar_lea.vmem [#allocation1], 4
    %902 = vst [vmem:[%s901] ss:$9 sm:$0xff] %v829
    %s904 = scalar_lea.vmem [#allocation1], 5
    %905 = vst [vmem:[%s904] ss:$9 sm:$0xff] %v830
    %s907 = scalar_lea.vmem [#allocation1], 6
    %908 = vst [vmem:[%s907] ss:$9 sm:$0xff] %v831
    %s910 = scalar_lea.vmem [#allocation1], 7
    %911 = vst [vmem:[%s910] ss:$9 sm:$0xff] %v832
    %v912 = vld [vmem:[#allocation1] sm:$0xff]
    %v913 = vld [vmem:[#allocation1 + $0x9] sm:$0xff]
    %v914 = vld [vmem:[#allocation1 + $0x12] sm:$0xff]
    %916 = vst [vmem:[#allocation1] ss:$9 sm:$0xff] %v833
    %918 = vst [vmem:[%s892] ss:$9 sm:$0xff] %v834
    %920 = vst [vmem:[%s895] ss:$9 sm:$0xff] %v835
    %922 = vst [vmem:[%s898] ss:$9 sm:$0xff] %v836
    %924 = vst [vmem:[%s901] ss:$9 sm:$0xff] %v837
    %926 = vst [vmem:[%s904] ss:$9 sm:$0xff] %v838
    %928 = vst [vmem:[%s907] ss:$9 sm:$0xff] %v839
    %930 = vst [vmem:[%s910] ss:$9 sm:$0xff] %v840
    %v931 = vld [vmem:[#allocation1] sm:$0xff]
    %v932 = vld [vmem:[#allocation1 + $0x9] sm:$0xff]
    %v933 = vld [vmem:[#allocation1 + $0x12] sm:$0xff]
    %v988 = vunpack.c.l.b16 %v841
    %v989 = vunpack.c.l.b16 %v842
    %v990 = vunpack.c.l.b16 %v843
    %v991 = vunpack.c.l.b16 %v844
    %v992 = vunpack.c.l.b16 %v845
    %v993 = vunpack.c.l.b16 %v846
    %v994 = vunpack.c.l.b16 %v847
    %v995 = vunpack.c.l.b16 %v848
    %v996 = vunpack.c.l.b16 %v849
    %v997 = vunpack.c.l.b16 %v850
    %v998 = vunpack.c.l.b16 %v851
    %v999 = vunpack.c.l.b16 %v852
    %v1000 = vunpack.c.l.b16 %v853
    %v1001 = vunpack.c.l.b16 %v854
    %v1002 = vunpack.c.l.b16 %v855
    %v1003 = vunpack.c.l.b16 %v856
    %v1004 = vunpack.c.l.b16 %v857
    %v1005 = vunpack.c.l.b16 %v858
    %v1006 = vunpack.c.l.b16 %v859
    %v1007 = vunpack.c.l.b16 %v860
    %v1008 = vunpack.c.l.b16 %v861
    %v1009 = vunpack.c.l.b16 %v862
    %v1010 = vunpack.c.l.b16 %v863
    %v1011 = vunpack.c.l.b16 %v864
    %v1012 = vunpack.c.l.b16 %v865
    %v1013 = vunpack.c.l.b16 %v866
    %v1014 = vunpack.c.l.b16 %v867
    %v1015 = vunpack.c.l.b16 %v868
    %v1016 = vunpack.c.l.b16 %v869
    %v1017 = vunpack.c.l.b16 %v870
    %v1018 = vunpack.c.l.b16 %v871
    %v1019 = vunpack.c.l.b16 %v872
    %v1020 = vunpack.c.l.b16 %v873
    %v1021 = vunpack.c.l.b16 %v874
    %v1022 = vunpack.c.l.b16 %v875
    %v1023 = vunpack.c.l.b16 %v876
    %v1024 = vunpack.c.l.b16 %v877
    %v1025 = vunpack.c.l.b16 %v878
    %v1026 = vunpack.c.l.b16 %v879
    %v1027 = vunpack.c.l.b16 %v880
    %v1028 = vunpack.c.l.b16 %v881
    %v1029 = vunpack.c.l.b16 %v882
    %v1030 = vunpack.c.l.b16 %v883
    %v1031 = vunpack.c.l.b16 %v884
    %v1032 = vunpack.c.l.b16 %v885
    %v1033 = vunpack.c.l.b16 %v886
    %v1034 = vunpack.c.l.b16 %v887
    %v1035 = vunpack.c.l.b16 %v888
    %v1036 = vpack.c.b16 %v989, %v988
    %v1037 = vpack.c.b16 %v991, %v990
    %v1038 = vpack.c.b16 %v993, %v992
    %v1039 = vpack.c.b16 %v995, %v994
    %v1040 = vpack.c.b16 %v997, %v996
    %v1041 = vpack.c.b16 %v999, %v998
    %v1042 = vpack.c.b16 %v1001, %v1000
    %v1043 = vpack.c.b16 %v1003, %v1002
    %v1044 = vpack.c.b16 %v1005, %v1004
    %v1045 = vpack.c.b16 %v1007, %v1006
    %v1046 = vpack.c.b16 %v1009, %v1008
    %v1047 = vpack.c.b16 %v1011, %v1010
    %v1048 = vpack.c.b16 %v1013, %v1012
    %v1049 = vpack.c.b16 %v1015, %v1014
    %v1050 = vpack.c.b16 %v1017, %v1016
    %v1051 = vpack.c.b16 %v1019, %v1018
    %v1052 = vpack.c.b16 %v1021, %v1020
    %v1053 = vpack.c.b16 %v1023, %v1022
    %v1054 = vpack.c.b16 %v1025, %v1024
    %v1055 = vpack.c.b16 %v1027, %v1026
    %v1056 = vpack.c.b16 %v1029, %v1028
    %v1057 = vpack.c.b16 %v1031, %v1030
    %v1058 = vpack.c.b16 %v1033, %v1032
    %v1059 = vpack.c.b16 %v1035, %v1034
    %1084 = vmatpush.bf16.msra.mxu0 %v1043
    %1085 = vmatpush.bf16.msra.mxu0 %v1042
    %1086 = vmatpush.bf16.msra.mxu0 %v1041
    %1087 = vmatpush.bf16.msra.mxu0 %v1040
    %1088 = vmatpush.bf16.msra.mxu0 %v1039
    %1089 = vmatpush.bf16.msra.mxu0 %v1038
    %1090 = vmatpush.bf16.msra.mxu0 %v1037
    %1091 = vmatpush.bf16.msra.mxu0 %v1036
    %1092 = vmatmul.bf16.gmra.mxu0 %v912
    %v1093 = vpop.f32.mrf.mxu0
    %v1094 = vadd.f32 %v667, %v1093
    %v1095 = vpop.f32.mrf.mxu0
    %v1096 = vadd.f32 %v669, %v1095
    %1097 = vmatmul.bf16.gmra.mxu0 %v931
    %v1098 = vpop.f32.mrf.mxu0
    %v1099 = vadd.f32 %v672, %v1098
    %v1100 = vpop.f32.mrf.mxu0
    %v1101 = vadd.f32 %v674, %v1100
    %1102 = vdwg.mxu0
    %1103 = vmatpush.bf16.msra.mxu0 %v1051
    %1104 = vmatpush.bf16.msra.mxu0 %v1050
    %1105 = vmatpush.bf16.msra.mxu0 %v1049
    %1106 = vmatpush.bf16.msra.mxu0 %v1048
    %1107 = vmatpush.bf16.msra.mxu0 %v1047
    %1108 = vmatpush.bf16.msra.mxu0 %v1046
    %1109 = vmatpush.bf16.msra.mxu0 %v1045
    %1110 = vmatpush.bf16.msra.mxu0 %v1044
    %1111 = vmatmul.bf16.gmra.mxu0 %v913
    %v1112 = vpop.f32.mrf.mxu0
    %v1113 = vadd.f32 %v1094, %v1112
    %v1114 = vpop.f32.mrf.mxu0
    %v1115 = vadd.f32 %v1096, %v1114
    %1116 = vmatmul.bf16.gmra.mxu0 %v932
    %v1117 = vpop.f32.mrf.mxu0
    %v1118 = vadd.f32 %v1099, %v1117
    %v1119 = vpop.f32.mrf.mxu0
    %v1120 = vadd.f32 %v1101, %v1119
    %1121 = vdwg.mxu0
    %1122 = vmatpush.bf16.msra.mxu0 %v1059
    %1123 = vmatpush.bf16.msra.mxu0 %v1058
    %1124 = vmatpush.bf16.msra.mxu0 %v1057
    %1125 = vmatpush.bf16.msra.mxu0 %v1056
    %1126 = vmatpush.bf16.msra.mxu0 %v1055
    %1127 = vmatpush.bf16.msra.mxu0 %v1054
    %1128 = vmatpush.bf16.msra.mxu0 %v1053
    %1129 = vmatpush.bf16.msra.mxu0 %v1052
    %1130 = vmatmul.bf16.gmra.mxu0 %v914
    %v1131 = vpop.f32.mrf.mxu0
    %v1132 = vadd.f32 %v1113, %v1131
    %v1133 = vpop.f32.mrf.mxu0
    %v1134 = vadd.f32 %v1115, %v1133
    %1135 = vmatmul.bf16.gmra.mxu0 %v933
    %v1136 = vpop.f32.mrf.mxu0
    %v1137 = vadd.f32 %v1118, %v1136
    %v1138 = vpop.f32.mrf.mxu0
    %v1139 = vadd.f32 %v1120, %v1138
    %1140 = vdwg.mxu0
    %v1145 = vrot.slane %v1132, 2
    %v1146 = vrot.slane %v1132, 4
    %v1147 = vrot.slane %v1132, 6
    %v1148 = vrot.slane %v1134, 2
    %v1149 = vrot.slane %v1134, 4
    %v1150 = vrot.slane %v1134, 6
    %v1151 = vrot.slane %v1137, 2
    %v1152 = vrot.slane %v1137, 4
    %v1153 = vrot.slane %v1137, 6
    %v1154 = vrot.slane %v1139, 2
    %v1155 = vrot.slane %v1139, 4
    %v1156 = vrot.slane %v1139, 6
    %v1169 = vpack.c.bf16 %v1132, %v1132
    %v1170 = vpack.c.bf16 %v1145, %v1145
    %v1171 = vpack.c.bf16 %v1146, %v1146
    %v1172 = vpack.c.bf16 %v1147, %v1147
    %v1173 = vpack.c.bf16 %v1134, %v1134
    %v1174 = vpack.c.bf16 %v1148, %v1148
    %v1175 = vpack.c.bf16 %v1149, %v1149
    %v1176 = vpack.c.bf16 %v1150, %v1150
    %v1177 = vpack.c.bf16 %v1137, %v1137
    %v1178 = vpack.c.bf16 %v1151, %v1151
    %v1179 = vpack.c.bf16 %v1152, %v1152
    %v1180 = vpack.c.bf16 %v1153, %v1153
    %v1181 = vpack.c.bf16 %v1139, %v1139
    %v1182 = vpack.c.bf16 %v1154, %v1154
    %v1183 = vpack.c.bf16 %v1155, %v1155
    %v1184 = vpack.c.bf16 %v1156, %v1156
    %1185 = vst [vmem:[#allocation12] sm:$0x1] %v1169
    %1186 = vst [vmem:[#allocation12 + $0x1] sm:$0x1] %v1170
    %1187 = vst [vmem:[#allocation12 + $0x2] sm:$0x1] %v1171
    %1188 = vst [vmem:[#allocation12 + $0x3] sm:$0x1] %v1172
    %1189 = vst [vmem:[#allocation12 + $0x4] sm:$0x1] %v1173
    %1190 = vst [vmem:[#allocation12 + $0x5] sm:$0x1] %v1174
    %1191 = vst [vmem:[#allocation12 + $0x6] sm:$0x1] %v1175
    %1192 = vst [vmem:[#allocation12 + $0x7] sm:$0x1] %v1176
    %1193 = vst [vmem:[#allocation12 + $0x8] sm:$0x1] %v1177
    %1194 = vst [vmem:[#allocation12 + $0x9] sm:$0x1] %v1178
    %1195 = vst [vmem:[#allocation12 + $0xa] sm:$0x1] %v1179
    %1196 = vst [vmem:[#allocation12 + $0xb] sm:$0x1] %v1180
    %1197 = vst [vmem:[#allocation12 + $0xc] sm:$0x1] %v1181
    %1198 = vst [vmem:[#allocation12 + $0xd] sm:$0x1] %v1182
    %1199 = vst [vmem:[#allocation12 + $0xe] sm:$0x1] %v1183
    %1200 = vst [vmem:[#allocation12 + $0xf] sm:$0x1] %v1184
    // Predicated region
    $region46: #{tpu_custom_call.1} parent=1 // pred_check
      _
    $region47: #{tpu_custom_call.1} parent=1 // pred_check_branch
      %1202 = sbr.rel (0) target = $region49
    $region48: #{tpu_custom_call.1} parent=1 // pred_region
      %1204 = vsyncadd [#allocation6], 0
      %s1205 = sshll.u32 [#allocation12], 4
      %s1206 = int_to_ptr.vmem [resolvable:$true] %s1205
      %s1207 = sshll.u32 %s7, 4
      %s1208 = int_to_ptr.hbm [resolvable:$true] %s1207
      %1213 = dma.vmem_to_hbm [thread:$0]  %s1206, 256, %s1208, [#allocation6], 16, 16, 1
    $region49: #{tpu_custom_call.1} parent=1 // pred_fallthru
      _
    // Predicated region
    $region50: #{tpu_custom_call.1} parent=1 // pred_check
      _
    $region51: #{tpu_custom_call.1} parent=1 // pred_check_branch
      %1215 = sbr.rel (0) target = $region53
    $region52: #{tpu_custom_call.1} parent=1 // pred_region
      %1217 = dma.done [#allocation6], 256
    $region53: #{tpu_custom_call.1} parent=1 // pred_fallthru
      _
    %1218 = vsyncpa [#allocation5], 1
    %1219 = vsyncpa [#allocation8], 1
    %1220 = vsyncpa [#allocation11], 1
    %1221 = vsyncpa [#allocation6], 1

</llo_original>
